<compile_context>
chip_gen: v7x
topology: tpu7x:2x2x1
jax: 0.10.0
libtpu: 0.0.40
codegen_flags: <defaults>
</compile_context>

<pallas_src>
import numpy as np
import jax
import jax.numpy as jnp
from jax import lax
from jax.experimental import pallas as pl
from jax.experimental.pallas import tpu as pltpu


def _round_up(x, m):
    return ((x + m - 1) // m) * m


def make_block(in_dim, out_dim, H, W, groups=8, eps=1e-5, key=None):
    assert out_dim % groups == 0
    cin, cout = in_dim, out_dim
    gs = cout // groups
    hw = H * W
    K = 9 * cin                               # im2col contraction length
    inv_n = 1.0 / float(gs * hw)

    # ----------------------------- parameters -------------------------------
    if key is None:
        key = jax.random.PRNGKey(0)
    kw_, kb_, kg_, kbt_ = jax.random.split(key, 4)
    bound = 1.0 / np.sqrt(cin * 9)
    w = jax.random.uniform(kw_, (cout, cin, 3, 3), jnp.float32, -bound, bound)
    b = jax.random.uniform(kb_, (cout,), jnp.float32, -bound, bound)
    gamma = 1.0 + 0.1 * jax.random.normal(kg_, (cout,), jnp.float32)
    beta = 0.1 * jax.random.normal(kbt_, (cout,), jnp.float32)

    # --------------- pack everything into ONE parameter slab ----------------
    # rows [ROW_W , +cout)   : transposed conv weight (cout, 9*cin) in lanes
    #                          [0, K); bias / gamma / beta as trailing columns
    # rows [ROW_MF, +groups) : channel->group membership  (groups, cout)
    # rows [ROW_MB, +cout)   : group->channel broadcast    (cout, groups)
    ROW_W = 0
    ROW_MF = _round_up(cout, 8)
    ROW_MB = _round_up(ROW_MF + groups, 8)
    R_TOTAL = _round_up(ROW_MB + cout, 8)
    COL_BIAS, COL_GAMMA, COL_BETA = K, K + 1, K + 2
    C_SLAB = max(K + 3, cout)

    # Wt[o, (kh*3+kw)*cin + ci] = W[o, ci, kh, kw]
    w_t = jnp.transpose(w, (0, 2, 3, 1)).reshape(cout, K)

    cidx = np.arange(cout)
    gidx = cidx // gs
    m_bwd = np.zeros((cout, groups), np.float32)       # [channel, group]
    m_bwd[cidx, gidx] = 1.0
    m_fwd = np.ascontiguousarray(m_bwd.T)              # [group, channel]

    slab = jnp.zeros((R_TOTAL, C_SLAB), jnp.float32)
    slab = slab.at[ROW_W:ROW_W + cout, 0:K].set(w_t)
    slab = slab.at[ROW_W:ROW_W + cout, COL_BIAS].set(b)
    slab = slab.at[ROW_W:ROW_W + cout, COL_GAMMA].set(gamma)
    slab = slab.at[ROW_W:ROW_W + cout, COL_BETA].set(beta)
    slab = slab.at[ROW_MF:ROW_MF + groups, 0:cout].set(jnp.asarray(m_fwd))
    slab = slab.at[ROW_MB:ROW_MB + cout, 0:groups].set(jnp.asarray(m_bwd))

    # --------------------------- fused kernel -------------------------------
    def _make_kernel(b_tile):
        def kernel(x_ref, p_ref, o_ref):
            # x_ref: (b_tile, K, hw)     im2col patches, hw on the lane axis
            # p_ref: (R_TOTAL, C_SLAB)   packed params (VMEM-resident, 1 DMA)
            # o_ref: (b_tile, cout, hw)  lane-dense output == NCHW per sample
            wb = p_ref[pl.ds(ROW_W, cout), pl.ds(0, K)]              # (cout, K)
            bias_c = p_ref[pl.ds(ROW_W, cout), pl.ds(COL_BIAS, 1)]   # (cout, 1)
            gamma_c = p_ref[pl.ds(ROW_W, cout), pl.ds(COL_GAMMA, 1)]
            beta_c = p_ref[pl.ds(ROW_W, cout), pl.ds(COL_BETA, 1)]
            m_f = p_ref[pl.ds(ROW_MF, groups), pl.ds(0, cout)]       # (groups, cout)
            m_b = p_ref[pl.ds(ROW_MB, cout), pl.ds(0, groups)]       # (cout, groups)

            for s in range(b_tile):                  # static unroll, per-sample GN
                # 3x3 conv == one MXU matmul over im2col patches
                y = jnp.dot(wb, x_ref[s], preferred_element_type=jnp.float32)
                y = y + bias_c                                       # (cout, hw)

                # GroupNorm: per-channel lane reduce, group stats via skinny matmuls
                s1 = jnp.sum(y, axis=1, keepdims=True)               # (cout, 1)
                s2 = jnp.sum(y * y, axis=1, keepdims=True)           # (cout, 1)
                mean_g = jnp.dot(m_f, s1, preferred_element_type=jnp.float32) * inv_n
                ex2_g = jnp.dot(m_f, s2, preferred_element_type=jnp.float32) * inv_n
                var_g = ex2_g - mean_g * mean_g
                rstd_g = lax.rsqrt(var_g + eps)
                mean_c = jnp.dot(m_b, mean_g, preferred_element_type=jnp.float32)
                rstd_c = jnp.dot(m_b, rstd_g, preferred_element_type=jnp.float32)

                scale = rstd_c * gamma_c                             # (cout, 1)
                shift = beta_c - mean_c * scale
                z = y * scale + shift                                # fused norm+affine
                o_ref[s] = z * jax.nn.sigmoid(z)                     # SiLU (EUP)
        return kernel

    # ------------------------------- wrapper --------------------------------
    def _pick_btile(B):
        # Fold batch per grid step (amortize per-step overhead) but keep >= 2
        # parallel grid blocks for v7x's two TensorCores, and stay well inside
        # the v7x scoped-VMEM default (input+output blocks are double-buffered).
        bytes_per_sample = 4 * hw * (K + cout)
        max_tile = max(1, (8 * 1024 * 1024) // (2 * bytes_per_sample))
        best = 1
        for d in range(1, min(B, 8, max_tile) + 1):
            if B % d == 0 and B // d >= 2:
                best = d
        return best

    def _forward(x_nchw):
        B = x_nchw.shape[0]
        b_tile = _pick_btile(B)
        x = x_nchw.astype(jnp.float32)
        # wrapper-side im2col: zero-pad, 9 shifted taps, stack -> (B, 9*cin, H*W).
        x_pad = jnp.pad(x, ((0, 0), (0, 0), (1, 1), (1, 1)))
        taps = [x_pad[:, :, kh:kh + H, kw:kw + W]
                for kh in range(3) for kw in range(3)]
        patches = jnp.stack(taps, axis=1).reshape(B, K, hw)

        out = pl.pallas_call(
            _make_kernel(b_tile),
            out_shape=jax.ShapeDtypeStruct((B, cout, hw), jnp.float32),
            grid=(B // b_tile,),
            in_specs=[
                pl.BlockSpec((b_tile, K, hw), lambda i: (i, 0, 0)),
                pl.BlockSpec((R_TOTAL, C_SLAB), lambda i: (0, 0)),   # resident params
            ],
            out_specs=pl.BlockSpec((b_tile, cout, hw), lambda i: (i, 0, 0)),
            compiler_params=pltpu.CompilerParams(
                dimension_semantics=("parallel",)),
        )(patches, slab)
        # (B, cout, H*W) is already NCHW up to a metadata reshape.
        # TODO(synk): add a spatial (hw) grid axis if H*W*cout ever approaches
        # the v7x 64 MiB physical VMEM / 32 MiB scoped default.
        return out.reshape(B, cout, H, W)

    forward = jax.jit(_forward)

    # pure-JAX reference (NCHW): Conv2d(3x3, pad=1) + GroupNorm(groups) + SiLU
    def forward_ref(x_nchw):
        x = x_nchw.astype(jnp.float32)
        y = lax.conv_general_dilated(
            x, w, window_strides=(1, 1), padding=((1, 1), (1, 1)),
            dimension_numbers=("NCHW", "OIHW", "NCHW"))
        y = y + b.reshape(1, cout, 1, 1)
        B = x.shape[0]
        yg = y.reshape(B, groups, gs * H * W)
        mean = jnp.mean(yg, axis=-1, keepdims=True)
        var = jnp.var(yg, axis=-1, keepdims=True)
        yn = (yg - mean) * lax.rsqrt(var + eps)
        yn = yn.reshape(B, cout, H, W)
        yn = yn * gamma.reshape(1, cout, 1, 1) + beta.reshape(1, cout, 1, 1)
        return yn * jax.nn.sigmoid(yn)

    return forward, forward_ref


if __name__ == "__main__":
    B, in_dim, out_dim, H, W, groups = 2, 8, 32, 16, 16, 8

    key = jax.random.PRNGKey(0)
    kparams, kx = jax.random.split(key)
    forward, forward_ref = make_block(in_dim, out_dim, H, W, groups=groups, key=kparams)

    x = jax.random.normal(kx, (B, in_dim, H, W), jnp.float32)   # NCHW input

    out = jax.block_until_ready(forward(x))
    ref = jax.block_until_ready(forward_ref(x))

    assert out.shape == (B, out_dim, H, W)
    np.testing.assert_allclose(np.asarray(out), np.asarray(ref), rtol=1e-4, atol=1e-4)
    print("KERNEL_OK")
</pallas_src>

<mosaic_0001>
module attributes {stable_mosaic.version = 11 : i64} {
  func.func @kernel(%arg0: i32, %arg1: memref<1x72x256xf32, #tpu.memory_space<vmem>>, %arg2: memref<72x75xf32, #tpu.memory_space<vmem>>, %arg3: memref<1x32x256xf32, #tpu.memory_space<vmem>>) attributes {dimension_semantics = [#tpu.dimension_semantics<parallel>], iteration_bounds = array<i64: 2>, scalar_prefetch = 0 : i64, scratch_operands = 0 : i64, tpu.core_type = #tpu.core_type<tc>, window_params = [{transform_indices = @transform_0, window_bounds = array<i64: 1, 72, 256>}, {pipeline_mode = #tpu.pipeline_mode<synchronous>, transform_indices = @transform_1, window_bounds = array<i64: 72, 75>}, {transform_indices = @transform_2, window_bounds = array<i64: 1, 32, 256>}]} {
    %c0 = arith.constant 0 : index
    %c0_0 = arith.constant 0 : index
    %0 = vector.load %arg2[%c0, %c0_0] : memref<72x75xf32, #tpu.memory_space<vmem>>, vector<32x72xf32>
    %c0_1 = arith.constant 0 : index
    %c72 = arith.constant 72 : index
    %1 = vector.load %arg2[%c0_1, %c72] : memref<72x75xf32, #tpu.memory_space<vmem>>, vector<32x1xf32>
    %c0_2 = arith.constant 0 : index
    %c73 = arith.constant 73 : index
    %2 = vector.load %arg2[%c0_2, %c73] : memref<72x75xf32, #tpu.memory_space<vmem>>, vector<32x1xf32>
    %c0_3 = arith.constant 0 : index
    %c74 = arith.constant 74 : index
    %3 = vector.load %arg2[%c0_3, %c74] : memref<72x75xf32, #tpu.memory_space<vmem>>, vector<32x1xf32>
    %c32 = arith.constant 32 : index
    %c0_4 = arith.constant 0 : index
    %4 = vector.load %arg2[%c32, %c0_4] : memref<72x75xf32, #tpu.memory_space<vmem>>, vector<8x32xf32>
    %c40 = arith.constant 40 : index
    %c0_5 = arith.constant 0 : index
    %5 = vector.load %arg2[%c40, %c0_5] : memref<72x75xf32, #tpu.memory_space<vmem>>, vector<32x8xf32>
    %c0_6 = arith.constant 0 : index
    %c0_7 = arith.constant 0 : index
    %c0_8 = arith.constant 0 : index
    %6 = vector.load %arg1[%c0_6, %c0_7, %c0_8] : memref<1x72x256xf32, #tpu.memory_space<vmem>>, vector<1x72x256xf32>
    %7 = vector.shape_cast %6 : vector<1x72x256xf32> to vector<72x256xf32>
    %cst = arith.constant dense<0.000000e+00> : vector<32x256xf32>
    %8 = tpu.matmul %0, %7, %cst {dimension_numbers = #tpu.dot_dimension_numbers<[1], [0], [0], [1], [0, 0, 1, 1], [], []>} : vector<32x72xf32>, vector<72x256xf32>, vector<32x256xf32> -> vector<32x256xf32>
    %9 = vector.broadcast %1 : vector<32x1xf32> to vector<32x256xf32>
    %10 = arith.addf %8, %9 : vector<32x256xf32>
    %cst_9 = arith.constant dense<0.000000e+00> : vector<32xf32>
    %11 = vector.multi_reduction <add>, %10, %cst_9 [1] : vector<32x256xf32> to vector<32xf32>
    %12 = vector.shape_cast %11 : vector<32xf32> to vector<32x1xf32>
    %13 = arith.mulf %10, %10 : vector<32x256xf32>
    %cst_10 = arith.constant dense<0.000000e+00> : vector<32xf32>
    %14 = vector.multi_reduction <add>, %13, %cst_10 [1] : vector<32x256xf32> to vector<32xf32>
    %15 = vector.shape_cast %14 : vector<32xf32> to vector<32x1xf32>
    %cst_11 = arith.constant dense<0.000000e+00> : vector<8x1xf32>
    %16 = tpu.matmul %4, %12, %cst_11 {dimension_numbers = #tpu.dot_dimension_numbers<[1], [0], [0], [1], [0, 0, 1, 1], [], []>} : vector<8x32xf32>, vector<32x1xf32>, vector<8x1xf32> -> vector<8x1xf32>
    %cst_12 = arith.constant 9.765625E-4 : f32
    %17 = vector.broadcast %cst_12 : f32 to vector<8x1xf32>
    %18 = arith.mulf %16, %17 : vector<8x1xf32>
    %cst_13 = arith.constant dense<0.000000e+00> : vector<8x1xf32>
    %19 = tpu.matmul %4, %15, %cst_13 {dimension_numbers = #tpu.dot_dimension_numbers<[1], [0], [0], [1], [0, 0, 1, 1], [], []>} : vector<8x32xf32>, vector<32x1xf32>, vector<8x1xf32> -> vector<8x1xf32>
    %cst_14 = arith.constant 9.765625E-4 : f32
    %20 = vector.broadcast %cst_14 : f32 to vector<8x1xf32>
    %21 = arith.mulf %19, %20 : vector<8x1xf32>
    %22 = arith.mulf %18, %18 : vector<8x1xf32>
    %23 = arith.subf %21, %22 : vector<8x1xf32>
    %cst_15 = arith.constant 9.99999974E-6 : f32
    %24 = vector.broadcast %cst_15 : f32 to vector<8x1xf32>
    %25 = arith.addf %23, %24 : vector<8x1xf32>
    %26 = math.rsqrt %25 : vector<8x1xf32>
    %cst_16 = arith.constant dense<0.000000e+00> : vector<32x1xf32>
    %27 = tpu.matmul %5, %18, %cst_16 {dimension_numbers = #tpu.dot_dimension_numbers<[1], [0], [0], [1], [0, 0, 1, 1], [], []>} : vector<32x8xf32>, vector<8x1xf32>, vector<32x1xf32> -> vector<32x1xf32>
    %cst_17 = arith.constant dense<0.000000e+00> : vector<32x1xf32>
    %28 = tpu.matmul %5, %26, %cst_17 {dimension_numbers = #tpu.dot_dimension_numbers<[1], [0], [0], [1], [0, 0, 1, 1], [], []>} : vector<32x8xf32>, vector<8x1xf32>, vector<32x1xf32> -> vector<32x1xf32>
    %29 = arith.mulf %28, %2 : vector<32x1xf32>
    %30 = arith.mulf %27, %29 : vector<32x1xf32>
    %31 = arith.subf %3, %30 : vector<32x1xf32>
    %32 = vector.broadcast %29 : vector<32x1xf32> to vector<32x256xf32>
    %33 = arith.mulf %10, %32 : vector<32x256xf32>
    %34 = vector.broadcast %31 : vector<32x1xf32> to vector<32x256xf32>
    %35 = arith.addf %33, %34 : vector<32x256xf32>
    %36 = arith.negf %35 : vector<32x256xf32>
    %37 = math.exp %36 : vector<32x256xf32>
    %cst_18 = arith.constant 1.000000e+00 : f32
    %38 = vector.broadcast %cst_18 : f32 to vector<32x256xf32>
    %39 = arith.addf %38, %37 : vector<32x256xf32>
    %40 = arith.divf %38, %39 : vector<32x256xf32>
    %41 = arith.mulf %35, %40 : vector<32x256xf32>
    %c0_19 = arith.constant 0 : index
    %c0_20 = arith.constant 0 : index
    %c0_21 = arith.constant 0 : index
    %42 = vector.load %arg3[%c0_19, %c0_20, %c0_21] : memref<1x32x256xf32, #tpu.memory_space<vmem>>, vector<1x32x256xf32>
    %43 = vector.shape_cast %42 : vector<1x32x256xf32> to vector<32x256xf32>
    %44 = vector.shape_cast %41 : vector<32x256xf32> to vector<1x32x256xf32>
    tpu.vector_store %arg3[%c0_19, %c0_20, %c0_21], %44 {strides = array<i32>} : memref<1x32x256xf32, #tpu.memory_space<vmem>>, vector<1x32x256xf32>,
    return
  }
  func.func @transform_0(%arg0: i32) -> (i32, i32, i32) {
    %c0_i32 = arith.constant 0 : i32
    %c0_i32_0 = arith.constant 0 : i32
    %c0_i32_1 = arith.constant 0 : i32
    return %arg0, %c0_i32, %c0_i32_0 : i32, i32, i32
  }
  func.func @transform_1(%arg0: i32) -> (i32, i32) {
    %c0_i32 = arith.constant 0 : i32
    %c0_i32_0 = arith.constant 0 : i32
    %c0_i32_1 = arith.constant 0 : i32
    return %c0_i32, %c0_i32_0 : i32, i32
  }
  func.func @transform_2(%arg0: i32) -> (i32, i32, i32) {
    %c0_i32 = arith.constant 0 : i32
    %c0_i32_0 = arith.constant 0 : i32
    %c0_i32_1 = arith.constant 0 : i32
    return %arg0, %c0_i32, %c0_i32_0 : i32, i32, i32
  }
}

</mosaic_0001>

<llo_original>
// kernel: _forward.1
$region0: #{_forward.1}
  #allocation0 [shape = 'u32[]', space=smem, size = 0x4, offset = 0x4, fixed_abs, tag = 'smem constant byte address 0x4 - core index']
  #allocation1 [shape = 'u32[144,128]{1,0:T(1,128)}', space=vmem, size = 0x12000, scoped, tag = 'internal scratch']
  %s0 = inlined_call_operand.vmem [shape: f32[2,72,256], index: 0, kind: input, shape index: {}]
  %s1 = inlined_call_operand.vmem [shape: f32[72,75], index: 1, kind: input, shape index: {}]
  %s2 = inlined_call_operand.vmem [shape: f32[2,32,256], index: 2, kind: output, shape index: {}]
  %s3 = sld [smem:[#allocation0]]
  $region41: #{_forward.1} parent=0
    _
  %s5 = ssub.s32 1, %s3
  %s6 = scalar_select 0, %s5, %s3
  loop: start=0, step=1, limit=4
  $region2: #{_forward.1} parent=0 // loop_pre_header
    _
  $region3: #{_forward.1} parent=0 // loop_header
    %s8 = sphi 0, %s12
    %p9 = scmp.ge.s32.totalorder %s8, 4
    %s18 = sphi 0, %s20
    %s21 = sphi 0, %s18
    %s22 = sphi 0, %s21
    %s38 = sphi 0, %s22
    %s42 = sphi 0, %s42
    %s44 = sphi 0, %s42
    %s45 = sphi 0, %s44
    %s59 = sphi 0, %s45
    %s65 = sphi 0, %s67
    %s68 = sphi 0, %s65
    %s69 = sphi 0, %s68
    %s85 = sphi 0, %s69
  $region4: #{_forward.1} parent=0 // loop_header_branch
    %11 = sbr.rel (%p9) target = $region8
  $region5: #{_forward.1} parent=0 // loop_body
    %s13 = ssub.s32 %s8, 1
    %s14 = ssub.s32 %s8, 2
    %s15 = sadd.s32 %s8, 1
    %s16 = ssub.s32 %s8, %s15
    %p17 = scmp.eq.s32.totalorder %s16, 0
    %s19 = sadd.s32 %s18, 1
    %s20 = scalar_select %p17, %s18, %s19
    %p23 = pneg %p17
    %p24 = scmp.eq.s32.totalorder %s8, 1
    %p25 = por %p23, %p24
    %p26 = scmp.ne.s32.totalorder %s18, %s21
    %p27 = scmp.eq.s32.totalorder %s8, 0
    %p28 = por %p26, %p27
    %p29 = scmp.ne.s32.totalorder %s18, %s21
    %p30 = scmp.eq.s32.totalorder %s13, 1
    %p31 = por %p29, %p30
    %p32 = scmp.ne.s32.totalorder %s21, %s22
    %p33 = scmp.eq.s32.totalorder %s13, 0
    %p34 = por %p32, %p33
    %p35 = scmp.ne.s32.totalorder %s21, %s22
    %p36 = scmp.eq.s32.totalorder %s14, 1
    %p37 = por %p35, %p36
    %p39 = scmp.ne.s32.totalorder %s22, %s38
    %p40 = scmp.eq.s32.totalorder %s14, 0
    %p41 = por %p39, %p40
    %s43 = sadd.s32 %s42, 1
    %p46 = scmp.eq.s32.totalorder %s8, 1
    %p47 = scmp.ne.s32.totalorder %s42, %s44
    %p48 = scmp.eq.s32.totalorder %s8, 0
    %p49 = por %p47, %p48
    %p50 = scmp.ne.s32.totalorder %s42, %s44
    %p51 = scmp.eq.s32.totalorder %s13, 1
    %p52 = por %p50, %p51
    %p53 = scmp.ne.s32.totalorder %s44, %s45
    %p54 = scmp.eq.s32.totalorder %s13, 0
    %p55 = por %p53, %p54
    %p56 = scmp.ne.s32.totalorder %s44, %s45
    %p57 = scmp.eq.s32.totalorder %s14, 1
    %p58 = por %p56, %p57
    %p60 = scmp.ne.s32.totalorder %s45, %s59
    %p61 = scmp.eq.s32.totalorder %s14, 0
    %p62 = por %p60, %p61
    %s63 = ssub.s32 %s8, %s15
    %p64 = scmp.eq.s32.totalorder %s63, 0
    %s66 = sadd.s32 %s65, 1
    %s67 = scalar_select %p64, %s65, %s66
    %p70 = pneg %p64
    %p71 = scmp.eq.s32.totalorder %s8, 1
    %p72 = por %p70, %p71
    %p73 = scmp.ne.s32.totalorder %s65, %s68
    %p74 = scmp.eq.s32.totalorder %s8, 0
    %p75 = por %p73, %p74
    %p76 = scmp.ne.s32.totalorder %s65, %s68
    %p77 = scmp.eq.s32.totalorder %s13, 1
    %p78 = por %p76, %p77
    %p79 = scmp.ne.s32.totalorder %s68, %s69
    %p80 = scmp.eq.s32.totalorder %s13, 0
    %p81 = por %p79, %p80
    %p82 = scmp.ne.s32.totalorder %s68, %s69
    %p83 = scmp.eq.s32.totalorder %s14, 1
    %p84 = por %p82, %p83
    %p86 = scmp.ne.s32.totalorder %s69, %s85
    %p87 = scmp.eq.s32.totalorder %s14, 0
    %p88 = por %p86, %p87
    %p89 = scmp.le.s32.totalorder 1, %s8
    %p90 = scmp.lt.s32.totalorder %s8, 3
    %p91 = pnand %p89, %p90
    %p92 = pneg %p91
    // Predicated region
    $region9: #{_forward.1} parent=5 // pred_check
      _
    $region10: #{_forward.1} parent=5 // pred_check_branch
      %94 = sbr.rel (%p91) target = $region12
    $region11: #{_forward.1} parent=5 // pred_region
      %s95 = ssub.s32 %s8, 1
      // Predicated region
      $region13: #{_forward.1} parent=11 // pred_check
        %p96 = pneg %p55
      $region14: #{_forward.1} parent=11 // pred_check_branch
        %98 = sbr.rel (%p96) target = $region16
      $region15: #{_forward.1} parent=11 // pred_region
        _
      $region16: #{_forward.1} parent=11 // pred_fallthru
        _
    $region12: #{_forward.1} parent=5 // pred_fallthru
      _
    %p99 = scmp.lt.s32.totalorder %s8, 2
    // Predicated region
    $region17: #{_forward.1} parent=5 // pred_check
      %p100 = pneg %p99
    $region18: #{_forward.1} parent=5 // pred_check_branch
      %102 = sbr.rel (%p100) target = $region20
    $region19: #{_forward.1} parent=5 // pred_region
      // Predicated region
      $region21: #{_forward.1} parent=19 // pred_check
        %p103 = pneg %p28
      $region22: #{_forward.1} parent=19 // pred_check_branch
        %105 = sbr.rel (%p103) target = $region24
      $region23: #{_forward.1} parent=19 // pred_region
        %p106 = scmp.lt.s32.totalorder %s8, 1
        %s107 = scalar_select %p106, %s8, 1
        %s108 = smul.addr %s107, 18
        %s109 = smul.addr %s108, 8
        %s110 = scalar_lea.vmem %s0, %s109
      $region24: #{_forward.1} parent=19 // pred_fallthru
        _
    $region20: #{_forward.1} parent=5 // pred_fallthru
      _
    %p111 = scmp.le.s32.totalorder 1, %s8
    %p112 = scmp.lt.s32.totalorder %s8, 3
    %p113 = pnand %p111, %p112
    %p114 = pneg %p113
    // Predicated region
    $region25: #{_forward.1} parent=5 // pred_check
      _
    $region26: #{_forward.1} parent=5 // pred_check_branch
      %116 = sbr.rel (%p113) target = $region28
    $region27: #{_forward.1} parent=5 // pred_region
      %s117 = ssub.s32 %s8, 1
      %p118 = scmp.lt.s32.totalorder %s13, 1
      %s119 = scalar_select %p118, %s13, 1
      %s120 = smul.addr %s119, 18
      %s121 = smul.addr %s120, 8
      %s122 = scalar_lea.vmem %s0, %s121
      %p123 = pneg %p34
      %p124 = pneg %p31
      %p125 = pneg %p55
      %p126 = pneg %p52
      %p127 = pneg %p81
      %p128 = pneg %p78
      %p129 = scmp.lt.s32.totalorder %s13, 1
      %s130 = scalar_select %p129, %s13, 1
      %s131 = smul.addr %s130, 8
      %s132 = smul.addr %s131, 8
      %s133 = scalar_lea.vmem %s2, %s132
      %p134 = scmp.lt.s32.totalorder %s13, 1
      %s135 = scalar_select %p134, %s13, 1
      %s136 = smul.addr %s135, 18
      %s137 = smul.addr %s136, 8
      %s138 = scalar_lea.vmem %s0, %s137
      %p139 = scmp.lt.s32.totalorder %s13, 1
      %s140 = scalar_select %p139, %s13, 1
      %s141 = smul.addr %s140, 8
      %s142 = smul.addr %s141, 8
      %s143 = scalar_lea.vmem %s2, %s142
      %v144 = vld [vmem:[%s1] sm:$0xff]
      %v145 = vld [vmem:[%s1 + $0x8] sm:$0xff]
      %v146 = vld [vmem:[%s1 + $0x10] sm:$0xff]
      %v147 = vld [vmem:[%s1 + $0x18] sm:$0xff]
      %v148 = vld [vmem:[%s1 + $0x20] sm:$0xff]
      %v149 = vld [vmem:[%s1 + $0x28] sm:$0xff]
      %v150 = vld [vmem:[%s1 + $0x30] sm:$0xff]
      %v151 = vld [vmem:[%s1 + $0x38] sm:$0xff]
      %v152 = vld [vmem:[%s1 + $0x40] sm:$0xff]
      %v153 = vld [vmem:[%s138] sm:$0xff]
      %v154 = vld [vmem:[%s138 + $0x8] sm:$0xff]
      %v155 = vld [vmem:[%s138 + $0x10] sm:$0xff]
      %v156 = vld [vmem:[%s138 + $0x18] sm:$0xff]
      %v157 = vld [vmem:[%s138 + $0x20] sm:$0xff]
      %v158 = vld [vmem:[%s138 + $0x28] sm:$0xff]
      %v159 = vld [vmem:[%s138 + $0x30] sm:$0xff]
      %v160 = vld [vmem:[%s138 + $0x38] sm:$0xff]
      %v161 = vld [vmem:[%s138 + $0x40] sm:$0xff]
      %v162 = vld [vmem:[%s138 + $0x48] sm:$0xff]
      %v163 = vld [vmem:[%s138 + $0x50] sm:$0xff]
      %v164 = vld [vmem:[%s138 + $0x58] sm:$0xff]
      %v165 = vld [vmem:[%s138 + $0x60] sm:$0xff]
      %v166 = vld [vmem:[%s138 + $0x68] sm:$0xff]
      %v167 = vld [vmem:[%s138 + $0x70] sm:$0xff]
      %v168 = vld [vmem:[%s138 + $0x78] sm:$0xff]
      %v169 = vld [vmem:[%s138 + $0x80] sm:$0xff]
      %v170 = vld [vmem:[%s138 + $0x88] sm:$0xff]
      %172 = vset.pattern.permute.xlu0 72
      %173 = vperm.xlu0 %172, %v144
      %v174 = vpop.permute.xlu0 %173
      %177 = vset.pattern.permute.xlu0 72
      %178 = vperm.xlu0 %177, %v145
      %v179 = vpop.permute.xlu0 %178
      %182 = vset.pattern.permute.xlu0 72
      %183 = vperm.xlu0 %182, %v146
      %v184 = vpop.permute.xlu0 %183
      %187 = vset.pattern.permute.xlu0 72
      %188 = vperm.xlu0 %187, %v147
      %v189 = vpop.permute.xlu0 %188
      %vm191 = vcmask 588800
      %v192 = vsel %vm191, %v144, 0
      %v194 = vsel %vm191, %v145, 0
      %v196 = vsel %vm191, %v146, 0
      %v198 = vsel %vm191, %v147, 0
      %200 = vmatprep.subr.mxu0 %v154
      %201 = vmatpush1.msra.mxu0 %v153
      %202 = vmatprep.subr.mxu0 %v156
      %203 = vmatpush1.msra.mxu0 %v155
      %204 = vmatprep.subr.mxu0 %v158
      %205 = vmatpush1.msra.mxu0 %v157
      %206 = vmatprep.subr.mxu0 %v160
      %207 = vmatpush1.msra.mxu0 %v159
      %208 = vmatprep.subr.mxu0 %v162
      %209 = vmatpush1.msra.mxu0 %v161
      %210 = vmatprep.subr.mxu0 %v164
      %211 = vmatpush1.msra.mxu0 %v163
      %212 = vmatprep.subr.mxu0 %v166
      %213 = vmatpush1.msra.mxu0 %v165
      %214 = vmatprep.subr.mxu0 %v168
      %215 = vmatpush1.msra.mxu0 %v167
      %216 = vmatprep.subr.mxu0 %v170
      %217 = vmatpush1.msra.mxu0 %v169
      %218 = vmatprep.subr.mxu0 0.0
      %219 = vmatpush1.msra.mxu0 0.0
      %220 = vmatprep.subr.mxu0 0.0
      %221 = vmatpush1.msra.mxu0 0.0
      %222 = vmatprep.subr.mxu0 0.0
      %223 = vmatpush1.msra.mxu0 0.0
      %224 = vmatprep.subr.mxu0 0.0
      %225 = vmatpush1.msra.mxu0 0.0
      %226 = vmatprep.subr.mxu0 0.0
      %227 = vmatpush1.msra.mxu0 0.0
      %228 = vmatprep.subr.mxu0 0.0
      %229 = vmatpush1.msra.mxu0 0.0
      %230 = vmatprep.subr.mxu0 0.0
      %231 = vmatpush1.msra.mxu0 0.0
      %232 = vmatprep.subr.mxu0 0.0
      %233 = vmatpush1.msra.mxu0 0.0
      %234 = vmatprep.subr.mxu0 0.0
      %235 = vmatpush1.msra.mxu0 0.0
      %236 = vmatprep.subr.mxu0 0.0
      %237 = vmatpush1.msra.mxu0 0.0
      %238 = vmatprep.subr.mxu0 0.0
      %239 = vmatpush1.msra.mxu0 0.0
      %240 = vmatprep.subr.mxu0 0.0
      %241 = vmatpush1.msra.mxu0 0.0
      %242 = vmatprep.subr.mxu0 0.0
      %243 = vmatpush1.msra.mxu0 0.0
      %244 = vmatprep.subr.mxu0 0.0
      %245 = vmatpush1.msra.mxu0 0.0
      %246 = vmatprep.subr.mxu0 0.0
      %247 = vmatpush1.msra.mxu0 0.0
      %248 = vmatprep.subr.mxu0 0.0
      %249 = vmatpush1.msra.mxu0 0.0
      %250 = vmatprep.subr.mxu0 0.0
      %251 = vmatpush1.msra.mxu0 0.0
      %252 = vmatprep.subr.mxu0 0.0
      %253 = vmatpush1.msra.mxu0 0.0
      %254 = vmatprep.subr.mxu0 0.0
      %255 = vmatpush1.msra.mxu0 0.0
      %256 = vmatprep.subr.mxu0 0.0
      %257 = vmatpush1.msra.mxu0 0.0
      %258 = vmatprep.subr.mxu0 0.0
      %259 = vmatpush1.msra.mxu0 0.0
      %260 = vmatprep.subr.mxu0 0.0
      %261 = vmatpush1.msra.mxu0 0.0
      %262 = vmatprep.subr.mxu0 0.0
      %263 = vmatpush1.msra.mxu0 0.0
      %264 = vmatprep.mubr.f32.mxu0 0.0
      %265 = vmatmul.mubr.f32.gmra.mrb[0].mxu0 %v192
      %v266 = vpop.f32.mrb[0].mxu0
      %v267 = vadd.f32 %v174, %v266
      %v268 = vpop.f32.mrb[0].mxu0
      %v269 = vadd.f32 %v174, %v268
      %270 = vmatprep.mubr.f32.mxu0 0.0
      %271 = vmatmul.mubr.f32.gmra.mrb[0].mxu0 %v194
      %v272 = vpop.f32.mrb[0].mxu0
      %v273 = vadd.f32 %v179, %v272
      %v274 = vpop.f32.mrb[0].mxu0
      %v275 = vadd.f32 %v179, %v274
      %276 = vmatprep.mubr.f32.mxu0 0.0
      %277 = vmatmul.mubr.f32.gmra.mrb[0].mxu0 %v196
      %v278 = vpop.f32.mrb[0].mxu0
      %v279 = vadd.f32 %v184, %v278
      %v280 = vpop.f32.mrb[0].mxu0
      %v281 = vadd.f32 %v184, %v280
      %282 = vmatprep.mubr.f32.mxu0 0.0
      %283 = vmatmul.mubr.f32.gmra.mrb[0].mxu0 %v198
      %v284 = vpop.f32.mrb[0].mxu0
      %v285 = vadd.f32 %v189, %v284
      %v286 = vpop.f32.mrb[0].mxu0
      %v287 = vadd.f32 %v189, %v286
      %288 = vdwg.mxu0
      %v289 = vadd.f32 %v267, %v269
      %290 = vadd.xlane.f32.xlu0 %v289
      %v291 = vpop.xlane.xlu0 %290
      %v292 = vadd.f32 %v273, %v275
      %293 = vadd.xlane.f32.xlu0 %v292
      %v294 = vpop.xlane.xlu0 %293
      %v295 = vadd.f32 %v279, %v281
      %296 = vadd.xlane.f32.xlu0 %v295
      %v297 = vpop.xlane.xlu0 %296
      %v298 = vadd.f32 %v285, %v287
      %299 = vadd.xlane.f32.xlu0 %v298
      %v300 = vpop.xlane.xlu0 %299
      %v301 = vmul.f32 %v267, %v267
      %v302 = vmul.f32 %v269, %v269
      %v303 = vmul.f32 %v273, %v273
      %v304 = vmul.f32 %v275, %v275
      %v305 = vmul.f32 %v279, %v279
      %v306 = vmul.f32 %v281, %v281
      %v307 = vmul.f32 %v285, %v285
      %v308 = vmul.f32 %v287, %v287
      %v309 = vadd.f32 %v301, %v302
      %310 = vadd.xlane.f32.xlu0 %v309
      %v311 = vpop.xlane.xlu0 %310
      %v312 = vadd.f32 %v303, %v304
      %313 = vadd.xlane.f32.xlu0 %v312
      %v314 = vpop.xlane.xlu0 %313
      %v315 = vadd.f32 %v305, %v306
      %316 = vadd.xlane.f32.xlu0 %v315
      %v317 = vpop.xlane.xlu0 %316
      %v318 = vadd.f32 %v307, %v308
      %319 = vadd.xlane.f32.xlu0 %v318
      %v320 = vpop.xlane.xlu0 %319
      %vm321 = vcmask 261120
      %v323 = vsel %vm321, %v148, 0
      %325 = vmatprep.subr.mxu0 0.0
      %326 = vmatpush1.msra.mxu0 %v291
      %327 = vmatprep.subr.mxu0 0.0
      %328 = vmatpush1.msra.mxu0 %v294
      %329 = vmatprep.subr.mxu0 0.0
      %330 = vmatpush1.msra.mxu0 %v297
      %331 = vmatprep.subr.mxu0 0.0
      %332 = vmatpush1.msra.mxu0 %v300
      %333 = vmatprep.subr.mxu0 0.0
      %334 = vmatpush1.msra.mxu0 0.0
      %335 = vmatprep.subr.mxu0 0.0
      %336 = vmatpush1.msra.mxu0 0.0
      %337 = vmatprep.subr.mxu0 0.0
      %338 = vmatpush1.msra.mxu0 0.0
      %339 = vmatprep.subr.mxu0 0.0
      %340 = vmatpush1.msra.mxu0 0.0
      %341 = vmatprep.subr.mxu0 0.0
      %342 = vmatpush1.msra.mxu0 0.0
      %343 = vmatprep.subr.mxu0 0.0
      %344 = vmatpush1.msra.mxu0 0.0
      %345 = vmatprep.subr.mxu0 0.0
      %346 = vmatpush1.msra.mxu0 0.0
      %347 = vmatprep.subr.mxu0 0.0
      %348 = vmatpush1.msra.mxu0 0.0
      %349 = vmatprep.subr.mxu0 0.0
      %350 = vmatpush1.msra.mxu0 0.0
      %351 = vmatprep.subr.mxu0 0.0
      %352 = vmatpush1.msra.mxu0 0.0
      %353 = vmatprep.subr.mxu0 0.0
      %354 = vmatpush1.msra.mxu0 0.0
      %355 = vmatprep.subr.mxu0 0.0
      %356 = vmatpush1.msra.mxu0 0.0
      %357 = vmatprep.subr.mxu0 0.0
      %358 = vmatpush1.msra.mxu0 0.0
      %359 = vmatprep.subr.mxu0 0.0
      %360 = vmatpush1.msra.mxu0 0.0
      %361 = vmatprep.subr.mxu0 0.0
      %362 = vmatpush1.msra.mxu0 0.0
      %363 = vmatprep.subr.mxu0 0.0
      %364 = vmatpush1.msra.mxu0 0.0
      %365 = vmatprep.subr.mxu0 0.0
      %366 = vmatpush1.msra.mxu0 0.0
      %367 = vmatprep.subr.mxu0 0.0
      %368 = vmatpush1.msra.mxu0 0.0
      %369 = vmatprep.subr.mxu0 0.0
      %370 = vmatpush1.msra.mxu0 0.0
      %371 = vmatprep.subr.mxu0 0.0
      %372 = vmatpush1.msra.mxu0 0.0
      %373 = vmatprep.subr.mxu0 0.0
      %374 = vmatpush1.msra.mxu0 0.0
      %375 = vmatprep.subr.mxu0 0.0
      %376 = vmatpush1.msra.mxu0 0.0
      %377 = vmatprep.subr.mxu0 0.0
      %378 = vmatpush1.msra.mxu0 0.0
      %379 = vmatprep.subr.mxu0 0.0
      %380 = vmatpush1.msra.mxu0 0.0
      %381 = vmatprep.subr.mxu0 0.0
      %382 = vmatpush1.msra.mxu0 0.0
      %383 = vmatprep.subr.mxu0 0.0
      %384 = vmatpush1.msra.mxu0 0.0
      %385 = vmatprep.subr.mxu0 0.0
      %386 = vmatpush1.msra.mxu0 0.0
      %387 = vmatprep.subr.mxu0 0.0
      %388 = vmatpush1.msra.mxu0 0.0
      %389 = vmatprep.mubr.f32.mxu0 0.0
      %390 = vmatmul.mubr.f32.gmra.mrb[0].mxu0 %v323
      %v391 = vpop.f32.mrb[0].mxu0
      %v392 = vadd.f32 0.0, %v391
      %v393 = vpop.f32.mrb[0].mxu0
      %394 = vdwg.mxu0
      %v395 = vmul.f32 %v392, 0.0009765625
      %396 = vmatprep.subr.mxu0 0.0
      %397 = vmatpush1.msra.mxu0 %v311
      %398 = vmatprep.subr.mxu0 0.0
      %399 = vmatpush1.msra.mxu0 %v314
      %400 = vmatprep.subr.mxu0 0.0
      %401 = vmatpush1.msra.mxu0 %v317
      %402 = vmatprep.subr.mxu0 0.0
      %403 = vmatpush1.msra.mxu0 %v320
      %404 = vmatprep.subr.mxu0 0.0
      %405 = vmatpush1.msra.mxu0 0.0
      %406 = vmatprep.subr.mxu0 0.0
      %407 = vmatpush1.msra.mxu0 0.0
      %408 = vmatprep.subr.mxu0 0.0
      %409 = vmatpush1.msra.mxu0 0.0
      %410 = vmatprep.subr.mxu0 0.0
      %411 = vmatpush1.msra.mxu0 0.0
      %412 = vmatprep.subr.mxu0 0.0
      %413 = vmatpush1.msra.mxu0 0.0
      %414 = vmatprep.subr.mxu0 0.0
      %415 = vmatpush1.msra.mxu0 0.0
      %416 = vmatprep.subr.mxu0 0.0
      %417 = vmatpush1.msra.mxu0 0.0
      %418 = vmatprep.subr.mxu0 0.0
      %419 = vmatpush1.msra.mxu0 0.0
      %420 = vmatprep.subr.mxu0 0.0
      %421 = vmatpush1.msra.mxu0 0.0
      %422 = vmatprep.subr.mxu0 0.0
      %423 = vmatpush1.msra.mxu0 0.0
      %424 = vmatprep.subr.mxu0 0.0
      %425 = vmatpush1.msra.mxu0 0.0
      %426 = vmatprep.subr.mxu0 0.0
      %427 = vmatpush1.msra.mxu0 0.0
      %428 = vmatprep.subr.mxu0 0.0
      %429 = vmatpush1.msra.mxu0 0.0
      %430 = vmatprep.subr.mxu0 0.0
      %431 = vmatpush1.msra.mxu0 0.0
      %432 = vmatprep.subr.mxu0 0.0
      %433 = vmatpush1.msra.mxu0 0.0
      %434 = vmatprep.subr.mxu0 0.0
      %435 = vmatpush1.msra.mxu0 0.0
      %436 = vmatprep.subr.mxu0 0.0
      %437 = vmatpush1.msra.mxu0 0.0
      %438 = vmatprep.subr.mxu0 0.0
      %439 = vmatpush1.msra.mxu0 0.0
      %440 = vmatprep.subr.mxu0 0.0
      %441 = vmatpush1.msra.mxu0 0.0
      %442 = vmatprep.subr.mxu0 0.0
      %443 = vmatpush1.msra.mxu0 0.0
      %444 = vmatprep.subr.mxu0 0.0
      %445 = vmatpush1.msra.mxu0 0.0
      %446 = vmatprep.subr.mxu0 0.0
      %447 = vmatpush1.msra.mxu0 0.0
      %448 = vmatprep.subr.mxu0 0.0
      %449 = vmatpush1.msra.mxu0 0.0
      %450 = vmatprep.subr.mxu0 0.0
      %451 = vmatpush1.msra.mxu0 0.0
      %452 = vmatprep.subr.mxu0 0.0
      %453 = vmatpush1.msra.mxu0 0.0
      %454 = vmatprep.subr.mxu0 0.0
      %455 = vmatpush1.msra.mxu0 0.0
      %456 = vmatprep.subr.mxu0 0.0
      %457 = vmatpush1.msra.mxu0 0.0
      %458 = vmatprep.subr.mxu0 0.0
      %459 = vmatpush1.msra.mxu0 0.0
      %460 = vmatprep.mubr.f32.mxu0 0.0
      %461 = vmatmul.mubr.f32.gmra.mrb[0].mxu0 %v323
      %v462 = vpop.f32.mrb[0].mxu0
      %v463 = vadd.f32 0.0, %v462
      %v464 = vpop.f32.mrb[0].mxu0
      %465 = vdwg.mxu0
      %v466 = vmul.f32 %v463, 0.0009765625
      %v467 = vmul.f32 %v395, %v395
      %v468 = vsub.f32 %v466, %v467
      %v469 = vadd.f32 %v468, 1e-05
      %v470 = vrsqrt.pop %v469
      %vm471 = vcmask 64512
      %v473 = vsel %vm471, %v149, 0
      %v476 = vsel %vm471, %v150, 0
      %v479 = vsel %vm471, %v151, 0
      %v482 = vsel %vm471, %v152, 0
      %484 = vmatprep.subr.mxu0 0.0
      %485 = vmatpush1.msra.mxu0 %v395
      %486 = vmatprep.subr.mxu0 0.0
      %487 = vmatpush1.msra.mxu0 0.0
      %488 = vmatprep.subr.mxu0 0.0
      %489 = vmatpush1.msra.mxu0 0.0
      %490 = vmatprep.subr.mxu0 0.0
      %491 = vmatpush1.msra.mxu0 0.0
      %492 = vmatprep.subr.mxu0 0.0
      %493 = vmatpush1.msra.mxu0 0.0
      %494 = vmatprep.subr.mxu0 0.0
      %495 = vmatpush1.msra.mxu0 0.0
      %496 = vmatprep.subr.mxu0 0.0
      %497 = vmatpush1.msra.mxu0 0.0
      %498 = vmatprep.subr.mxu0 0.0
      %499 = vmatpush1.msra.mxu0 0.0
      %500 = vmatprep.subr.mxu0 0.0
      %501 = vmatpush1.msra.mxu0 0.0
      %502 = vmatprep.subr.mxu0 0.0
      %503 = vmatpush1.msra.mxu0 0.0
      %504 = vmatprep.subr.mxu0 0.0
      %505 = vmatpush1.msra.mxu0 0.0
      %506 = vmatprep.subr.mxu0 0.0
      %507 = vmatpush1.msra.mxu0 0.0
      %508 = vmatprep.subr.mxu0 0.0
      %509 = vmatpush1.msra.mxu0 0.0
      %510 = vmatprep.subr.mxu0 0.0
      %511 = vmatpush1.msra.mxu0 0.0
      %512 = vmatprep.subr.mxu0 0.0
      %513 = vmatpush1.msra.mxu0 0.0
      %514 = vmatprep.subr.mxu0 0.0
      %515 = vmatpush1.msra.mxu0 0.0
      %516 = vmatprep.subr.mxu0 0.0
      %517 = vmatpush1.msra.mxu0 0.0
      %518 = vmatprep.subr.mxu0 0.0
      %519 = vmatpush1.msra.mxu0 0.0
      %520 = vmatprep.subr.mxu0 0.0
      %521 = vmatpush1.msra.mxu0 0.0
      %522 = vmatprep.subr.mxu0 0.0
      %523 = vmatpush1.msra.mxu0 0.0
      %524 = vmatprep.subr.mxu0 0.0
      %525 = vmatpush1.msra.mxu0 0.0
      %526 = vmatprep.subr.mxu0 0.0
      %527 = vmatpush1.msra.mxu0 0.0
      %528 = vmatprep.subr.mxu0 0.0
      %529 = vmatpush1.msra.mxu0 0.0
      %530 = vmatprep.subr.mxu0 0.0
      %531 = vmatpush1.msra.mxu0 0.0
      %532 = vmatprep.subr.mxu0 0.0
      %533 = vmatpush1.msra.mxu0 0.0
      %534 = vmatprep.subr.mxu0 0.0
      %535 = vmatpush1.msra.mxu0 0.0
      %536 = vmatprep.subr.mxu0 0.0
      %537 = vmatpush1.msra.mxu0 0.0
      %538 = vmatprep.subr.mxu0 0.0
      %539 = vmatpush1.msra.mxu0 0.0
      %540 = vmatprep.subr.mxu0 0.0
      %541 = vmatpush1.msra.mxu0 0.0
      %542 = vmatprep.subr.mxu0 0.0
      %543 = vmatpush1.msra.mxu0 0.0
      %544 = vmatprep.subr.mxu0 0.0
      %545 = vmatpush1.msra.mxu0 0.0
      %546 = vmatprep.subr.mxu0 0.0
      %547 = vmatpush1.msra.mxu0 0.0
      %548 = vmatprep.mubr.f32.mxu0 0.0
      %549 = vmatmul.mubr.f32.gmra.mrb[0].mxu0 %v473
      %v550 = vpop.f32.mrb[0].mxu0
      %v551 = vadd.f32 0.0, %v550
      %v552 = vpop.f32.mrb[0].mxu0
      %553 = vmatprep.mubr.f32.mxu0 0.0
      %554 = vmatmul.mubr.f32.gmra.mrb[0].mxu0 %v476
      %v555 = vpop.f32.mrb[0].mxu0
      %v556 = vadd.f32 0.0, %v555
      %v557 = vpop.f32.mrb[0].mxu0
      %558 = vmatprep.mubr.f32.mxu0 0.0
      %559 = vmatmul.mubr.f32.gmra.mrb[0].mxu0 %v479
      %v560 = vpop.f32.mrb[0].mxu0
      %v561 = vadd.f32 0.0, %v560
      %v562 = vpop.f32.mrb[0].mxu0
      %563 = vmatprep.mubr.f32.mxu0 0.0
      %564 = vmatmul.mubr.f32.gmra.mrb[0].mxu0 %v482
      %v565 = vpop.f32.mrb[0].mxu0
      %v566 = vadd.f32 0.0, %v565
      %v567 = vpop.f32.mrb[0].mxu0
      %568 = vdwg.mxu0
      %569 = vmatprep.subr.mxu0 0.0
      %570 = vmatpush1.msra.mxu0 %v470
      %571 = vmatprep.subr.mxu0 0.0
      %572 = vmatpush1.msra.mxu0 0.0
      %573 = vmatprep.subr.mxu0 0.0
      %574 = vmatpush1.msra.mxu0 0.0
      %575 = vmatprep.subr.mxu0 0.0
      %576 = vmatpush1.msra.mxu0 0.0
      %577 = vmatprep.subr.mxu0 0.0
      %578 = vmatpush1.msra.mxu0 0.0
      %579 = vmatprep.subr.mxu0 0.0
      %580 = vmatpush1.msra.mxu0 0.0
      %581 = vmatprep.subr.mxu0 0.0
      %582 = vmatpush1.msra.mxu0 0.0
      %583 = vmatprep.subr.mxu0 0.0
      %584 = vmatpush1.msra.mxu0 0.0
      %585 = vmatprep.subr.mxu0 0.0
      %586 = vmatpush1.msra.mxu0 0.0
      %587 = vmatprep.subr.mxu0 0.0
      %588 = vmatpush1.msra.mxu0 0.0
      %589 = vmatprep.subr.mxu0 0.0
      %590 = vmatpush1.msra.mxu0 0.0
      %591 = vmatprep.subr.mxu0 0.0
      %592 = vmatpush1.msra.mxu0 0.0
      %593 = vmatprep.subr.mxu0 0.0
      %594 = vmatpush1.msra.mxu0 0.0
      %595 = vmatprep.subr.mxu0 0.0
      %596 = vmatpush1.msra.mxu0 0.0
      %597 = vmatprep.subr.mxu0 0.0
      %598 = vmatpush1.msra.mxu0 0.0
      %599 = vmatprep.subr.mxu0 0.0
      %600 = vmatpush1.msra.mxu0 0.0
      %601 = vmatprep.subr.mxu0 0.0
      %602 = vmatpush1.msra.mxu0 0.0
      %603 = vmatprep.subr.mxu0 0.0
      %604 = vmatpush1.msra.mxu0 0.0
      %605 = vmatprep.subr.mxu0 0.0
      %606 = vmatpush1.msra.mxu0 0.0
      %607 = vmatprep.subr.mxu0 0.0
      %608 = vmatpush1.msra.mxu0 0.0
      %609 = vmatprep.subr.mxu0 0.0
      %610 = vmatpush1.msra.mxu0 0.0
      %611 = vmatprep.subr.mxu0 0.0
      %612 = vmatpush1.msra.mxu0 0.0
      %613 = vmatprep.subr.mxu0 0.0
      %614 = vmatpush1.msra.mxu0 0.0
      %615 = vmatprep.subr.mxu0 0.0
      %616 = vmatpush1.msra.mxu0 0.0
      %617 = vmatprep.subr.mxu0 0.0
      %618 = vmatpush1.msra.mxu0 0.0
      %619 = vmatprep.subr.mxu0 0.0
      %620 = vmatpush1.msra.mxu0 0.0
      %621 = vmatprep.subr.mxu0 0.0
      %622 = vmatpush1.msra.mxu0 0.0
      %623 = vmatprep.subr.mxu0 0.0
      %624 = vmatpush1.msra.mxu0 0.0
      %625 = vmatprep.subr.mxu0 0.0
      %626 = vmatpush1.msra.mxu0 0.0
      %627 = vmatprep.subr.mxu0 0.0
      %628 = vmatpush1.msra.mxu0 0.0
      %629 = vmatprep.subr.mxu0 0.0
      %630 = vmatpush1.msra.mxu0 0.0
      %631 = vmatprep.subr.mxu0 0.0
      %632 = vmatpush1.msra.mxu0 0.0
      %633 = vmatprep.mubr.f32.mxu0 0.0
      %634 = vmatmul.mubr.f32.gmra.mrb[0].mxu0 %v473
      %v635 = vpop.f32.mrb[0].mxu0
      %v636 = vadd.f32 0.0, %v635
      %v637 = vpop.f32.mrb[0].mxu0
      %638 = vmatprep.mubr.f32.mxu0 0.0
      %639 = vmatmul.mubr.f32.gmra.mrb[0].mxu0 %v476
      %v640 = vpop.f32.mrb[0].mxu0
      %v641 = vadd.f32 0.0, %v640
      %v642 = vpop.f32.mrb[0].mxu0
      %643 = vmatprep.mubr.f32.mxu0 0.0
      %644 = vmatmul.mubr.f32.gmra.mrb[0].mxu0 %v479
      %v645 = vpop.f32.mrb[0].mxu0
      %v646 = vadd.f32 0.0, %v645
      %v647 = vpop.f32.mrb[0].mxu0
      %648 = vmatprep.mubr.f32.mxu0 0.0
      %649 = vmatmul.mubr.f32.gmra.mrb[0].mxu0 %v482
      %v650 = vpop.f32.mrb[0].mxu0
      %v651 = vadd.f32 0.0, %v650
      %v652 = vpop.f32.mrb[0].mxu0
      %653 = vdwg.mxu0
      %654 = vrot.lane.b32.xlu0 %v144, 55
      %v655 = vpop.permute.xlu0 %654
      %656 = vrot.lane.b32.xlu0 %v145, 55
      %v657 = vpop.permute.xlu0 %656
      %658 = vrot.lane.b32.xlu0 %v146, 55
      %v659 = vpop.permute.xlu0 %658
      %660 = vrot.lane.b32.xlu0 %v147, 55
      %v661 = vpop.permute.xlu0 %660
      %v666 = vmul.f32 %v636, %v655
      %v667 = vmul.f32 %v641, %v657
      %v668 = vmul.f32 %v646, %v659
      %v669 = vmul.f32 %v651, %v661
      %v670 = vmul.f32 %v551, %v666
      %v671 = vmul.f32 %v556, %v667
      %v672 = vmul.f32 %v561, %v668
      %v673 = vmul.f32 %v566, %v669
      %678 = vrot.lane.b32.xlu0 %v670, 74
      %v679 = vpop.permute.xlu0 %678
      %680 = vrot.lane.b32.xlu0 %v671, 74
      %v681 = vpop.permute.xlu0 %680
      %682 = vrot.lane.b32.xlu0 %v672, 74
      %v683 = vpop.permute.xlu0 %682
      %684 = vrot.lane.b32.xlu0 %v673, 74
      %v685 = vpop.permute.xlu0 %684
      %v690 = vsub.f32 %v144, %v679
      %v691 = vsub.f32 %v145, %v681
      %v692 = vsub.f32 %v146, %v683
      %v693 = vsub.f32 %v147, %v685
      %695 = vset.pattern.permute.xlu0 0
      %696 = vperm.xlu0 %695, %v666
      %v697 = vpop.permute.xlu0 %696
      %700 = vset.pattern.permute.xlu0 0
      %701 = vperm.xlu0 %700, %v667
      %v702 = vpop.permute.xlu0 %701
      %705 = vset.pattern.permute.xlu0 0
      %706 = vperm.xlu0 %705, %v668
      %v707 = vpop.permute.xlu0 %706
      %710 = vset.pattern.permute.xlu0 0
      %711 = vperm.xlu0 %710, %v669
      %v712 = vpop.permute.xlu0 %711
      %v714 = vmul.f32 %v267, %v697
      %v715 = vmul.f32 %v269, %v697
      %v716 = vmul.f32 %v273, %v702
      %v717 = vmul.f32 %v275, %v702
      %v718 = vmul.f32 %v279, %v707
      %v719 = vmul.f32 %v281, %v707
      %v720 = vmul.f32 %v285, %v712
      %v721 = vmul.f32 %v287, %v712
      %723 = vset.pattern.permute.xlu0 74
      %724 = vperm.xlu0 %723, %v690
      %v725 = vpop.permute.xlu0 %724
      %728 = vset.pattern.permute.xlu0 74
      %729 = vperm.xlu0 %728, %v691
      %v730 = vpop.permute.xlu0 %729
      %733 = vset.pattern.permute.xlu0 74
      %734 = vperm.xlu0 %733, %v692
      %v735 = vpop.permute.xlu0 %734
      %738 = vset.pattern.permute.xlu0 74
      %739 = vperm.xlu0 %738, %v693
      %v740 = vpop.permute.xlu0 %739
      %v742 = vadd.f32 %v714, %v725
      %v743 = vadd.f32 %v715, %v725
      %v744 = vadd.f32 %v716, %v730
      %v745 = vadd.f32 %v717, %v730
      %v746 = vadd.f32 %v718, %v735
      %v747 = vadd.f32 %v719, %v735
      %v748 = vadd.f32 %v720, %v740
      %v749 = vadd.f32 %v721, %v740
      %v750 = vxor.u32 %v742, 2147483648
      %v751 = vxor.u32 %v743, 2147483648
      %v752 = vxor.u32 %v744, 2147483648
      %v753 = vxor.u32 %v745, 2147483648
      %v754 = vxor.u32 %v746, 2147483648
      %v755 = vxor.u32 %v747, 2147483648
      %v756 = vxor.u32 %v748, 2147483648
      %v757 = vxor.u32 %v749, 2147483648
      %v758 = vmul.f32 %v750, 1.442695
      %v759 = vpow.pop %v758
      %v760 = vmul.f32 %v751, 1.442695
      %v761 = vpow.pop %v760
      %v762 = vmul.f32 %v752, 1.442695
      %v763 = vpow.pop %v762
      %v764 = vmul.f32 %v753, 1.442695
      %v765 = vpow.pop %v764
      %v766 = vmul.f32 %v754, 1.442695
      %v767 = vpow.pop %v766
      %v768 = vmul.f32 %v755, 1.442695
      %v769 = vpow.pop %v768
      %v770 = vmul.f32 %v756, 1.442695
      %v771 = vpow.pop %v770
      %v772 = vmul.f32 %v757, 1.442695
      %v773 = vpow.pop %v772
      %v774 = vadd.f32 %v759, 1.0
      %v775 = vadd.f32 %v761, 1.0
      %v776 = vadd.f32 %v763, 1.0
      %v777 = vadd.f32 %v765, 1.0
      %v778 = vadd.f32 %v767, 1.0
      %v779 = vadd.f32 %v769, 1.0
      %v780 = vadd.f32 %v771, 1.0
      %v781 = vadd.f32 %v773, 1.0
      %v782 = vrcp.pop %v774
      %v783 = vmul.f32 1.0, %v782
      %v784 = vrcp.pop %v775
      %v785 = vmul.f32 1.0, %v784
      %v786 = vrcp.pop %v776
      %v787 = vmul.f32 1.0, %v786
      %v788 = vrcp.pop %v777
      %v789 = vmul.f32 1.0, %v788
      %v790 = vrcp.pop %v778
      %v791 = vmul.f32 1.0, %v790
      %v792 = vrcp.pop %v779
      %v793 = vmul.f32 1.0, %v792
      %v794 = vrcp.pop %v780
      %v795 = vmul.f32 1.0, %v794
      %v796 = vrcp.pop %v781
      %v797 = vmul.f32 1.0, %v796
      %v798 = vmul.f32 %v742, %v783
      %v799 = vmul.f32 %v743, %v785
      %v800 = vmul.f32 %v744, %v787
      %v801 = vmul.f32 %v745, %v789
      %v802 = vmul.f32 %v746, %v791
      %v803 = vmul.f32 %v747, %v793
      %v804 = vmul.f32 %v748, %v795
      %v805 = vmul.f32 %v749, %v797
      %806 = vst [vmem:[%s143] sm:$0xff] %v798
      %807 = vst [vmem:[%s143 + $0x8] sm:$0xff] %v799
      %808 = vst [vmem:[%s143 + $0x10] sm:$0xff] %v800
      %809 = vst [vmem:[%s143 + $0x18] sm:$0xff] %v801
      %810 = vst [vmem:[%s143 + $0x20] sm:$0xff] %v802
      %811 = vst [vmem:[%s143 + $0x28] sm:$0xff] %v803
      %812 = vst [vmem:[%s143 + $0x30] sm:$0xff] %v804
      %813 = vst [vmem:[%s143 + $0x38] sm:$0xff] %v805
      %p814 = scmp.lt.s32.totalorder %s13, 1
      %s815 = scalar_select %p814, %s13, 1
      %s816 = smul.addr %s815, 8
      %s817 = smul.addr %s816, 8
      %s818 = scalar_lea.vmem %s2, %s817
      // Predicated region
      $region29: #{_forward.1} parent=27 // pred_check
        %p819 = pneg %p78
      $region30: #{_forward.1} parent=27 // pred_check_branch
        %821 = sbr.rel (%p819) target = $region32
      $region31: #{_forward.1} parent=27 // pred_region
        _
      $region32: #{_forward.1} parent=27 // pred_fallthru
        _
    $region28: #{_forward.1} parent=5 // pred_fallthru
      _
    %p822 = scmp.le.s32.totalorder 2, %s8
    // Predicated region
    $region33: #{_forward.1} parent=5 // pred_check
      %p823 = pneg %p822
    $region34: #{_forward.1} parent=5 // pred_check_branch
      %825 = sbr.rel (%p823) target = $region36
    $region35: #{_forward.1} parent=5 // pred_region
      %s826 = ssub.s32 %s8, 2
      // Predicated region
      $region37: #{_forward.1} parent=35 // pred_check
        %p827 = pneg %p84
      $region38: #{_forward.1} parent=35 // pred_check_branch
        %829 = sbr.rel (%p827) target = $region40
      $region39: #{_forward.1} parent=35 // pred_region
        %p830 = scmp.lt.s32.totalorder %s14, 1
        %s831 = scalar_select %p830, %s14, 1
        %s832 = smul.addr %s831, 8
        %s833 = smul.addr %s832, 8
        %s834 = scalar_lea.vmem %s2, %s833
      $region40: #{_forward.1} parent=35 // pred_fallthru
        _
    $region36: #{_forward.1} parent=5 // pred_fallthru
      _
  $region6: #{_forward.1} parent=0 // loop_footer
    %s12 = sadd.s32 1, %s8
  $region7: #{_forward.1} parent=0 // loop_footer_branch
    %7 = sbr.rel target = $region3
  $region8: #{_forward.1} parent=0 // loop_exit
    _

</llo_original>
